<compile_context>
chip_gen: v7x
topology: tpu7x:2x2x1
jax: 0.10.0
libtpu: 0.0.40
codegen_flags: <defaults>
</compile_context>

<pallas_src>
import functools

import jax
import jax.numpy as jnp
from jax.experimental import pallas as pl
from jax.experimental.pallas import tpu as pltpu


def camera_kernel(x_ref, w1_ref, b1_ref, w2_ref, b2_ref, fcw_ref, fcb_ref,
                  o_ref, *, seq_len):
    """One grid step: TB batch elements, flattened to (N, 3*Cin), N = TB*L."""
    x9 = x_ref[...]                                   # (N, 9), im2col'd wrapper-side
    n_rows = x9.shape[0]
    tb = n_rows // seq_len

    # conv1 + ReLU: single matmul, no in-kernel shifts (im2col hoisted out).
    h1 = jnp.dot(x9, w1_ref[...], preferred_element_type=jnp.float32)
    h1 = jnp.maximum(h1 + b1_ref[...], 0.0)           # (N, 16)

    # Sequence-boundary masks (position within each length-L sequence),
    # computed once for conv2's neighbour taps.
    row = jax.lax.broadcasted_iota(jnp.int32, (n_rows, 1), 0)
    pos = row % seq_len
    is_first = pos == 0
    is_last = pos == seq_len - 1

    # conv2 + ReLU: three accumulated matmuls (no lane-axis concatenate).
    # k=1 (center) tap first, then k=0 (reads h[l-1]) and k=2 (reads h[l+1]);
    # rows that would read across a sequence boundary are zero-masked, which
    # matches PyTorch Conv1d(padding=1) zero padding.
    y = jnp.dot(h1, w2_ref[1], preferred_element_type=jnp.float32)
    h_prev = jnp.where(is_first, 0.0, pltpu.roll(h1, shift=1, axis=0))
    y = y + jnp.dot(h_prev, w2_ref[0], preferred_element_type=jnp.float32)
    h_next = jnp.where(is_last, 0.0, pltpu.roll(h1, shift=n_rows - 1, axis=0))
    y = y + jnp.dot(h_next, w2_ref[2], preferred_element_type=jnp.float32)
    h2 = jnp.maximum(y + b2_ref[...], 0.0)            # (N, 32)

    # Global average pool per batch element: reshape and reduce over L only
    # (L is a multiple of 8 so the sublane tiling is preserved by the reshape).
    pooled = jnp.mean(h2.reshape(tb, seq_len, h2.shape[-1]), axis=1)   # (TB, 32)

    out = jnp.dot(pooled, fcw_ref[...],
                  preferred_element_type=jnp.float32) + fcb_ref[...]   # (TB, 256)
    o_ref[...] = out.astype(o_ref.dtype)


def _pick_tb(batch, cap=256):
    """Batch elements per grid step.

    Rules: whole batch for tiny B; otherwise a divisor of B that is a multiple
    of 8 (sublane alignment for the (TB, 256) output tile), capped at `cap`
    and at B//2 so there are always >= 2 grid steps (lets v7x's two
    TensorCores split the batch).  Falls back to TB=B (single, fully-aligned
    tile) if no such divisor exists.
    """
    if batch <= 8:
        return batch
    limit = min(cap, batch // 2) if batch >= 16 else min(cap, batch)
    for tb in range(limit, 7, -1):
        if batch % tb == 0 and tb % 8 == 0:
            return tb
    return batch


def camera_model(x, params, tb=None):
    """x: (B, L, 3) float32; params: (w1, b1, w2, b2, fcw, fcb).

    Conv weights are stored as (K=3, Cin, Cout); biases as (1, Cout);
    fc1 weight as (32, 256) (i.e. torch fc1.weight.T); fc bias as (1, 256).
    """
    w1, b1, w2, b2, fcw, fcb = params
    B, L, Cin = x.shape
    n_out = fcw.shape[1]
    c1 = w1.shape[-1]
    c2 = w2.shape[-1]

    if tb is None:
        tb = _pick_tb(B)
    assert B % tb == 0 and (tb % 8 == 0 or tb == B), (B, tb)

    # Hoist conv1's im2col to the wrapper: columns ordered [prev | center | next]
    # to match w1.reshape(K*Cin, Cout) row ordering (k-major, cin-minor).
    x_prev = jnp.pad(x[:, :-1, :], ((0, 0), (1, 0), (0, 0)))
    x_next = jnp.pad(x[:, 1:, :], ((0, 0), (0, 1), (0, 0)))
    x9 = jnp.concatenate([x_prev, x, x_next], axis=-1).reshape(B * L, 3 * Cin)

    w1c = w1.reshape(3 * Cin, c1)          # (9, 16)

    # Real (tiny) cost of this kernel: keep XLA's scheduler honest.
    flops = 2 * B * L * (3 * Cin * c1 + 3 * c1 * c2) + 2 * B * c2 * n_out
    bytes_accessed = (x9.size + B * n_out + w1c.size + b1.size + w2.size
                      + b2.size + fcw.size + fcb.size) * 4
    cost = pl.CostEstimate(flops=flops, transcendentals=0,
                           bytes_accessed=bytes_accessed)

    # Per-batch-element VMEM footprint estimate (lane-padded to 128):
    #   double-buffered input tile + ~5 live (L, <=128)-lane activation temps
    #   + double-buffered output row.  Clamp to a range valid on v5e/v6e/v7x.
    per_elem = (2 * L * 128 * 4) + (5 * L * 128 * 4) + (2 * n_out * 4)
    vmem_limit = max(16 << 20, min(64 << 20, 2 * tb * per_elem + (1 << 20)))

    kernel = functools.partial(camera_kernel, seq_len=L)
    return pl.pallas_call(
        kernel,
        out_shape=jax.ShapeDtypeStruct((B, n_out), jnp.float32),
        grid_spec=pltpu.PrefetchScalarGridSpec(
            num_scalar_prefetch=0,
            grid=(B // tb,),
            in_specs=[
                pl.BlockSpec((tb * L, 3 * Cin), lambda b: (b, 0)),
                pl.BlockSpec(w1c.shape, lambda b: (0, 0)),
                pl.BlockSpec(b1.shape, lambda b: (0, 0)),
                pl.BlockSpec(w2.shape, lambda b: (0, 0, 0)),
                pl.BlockSpec(b2.shape, lambda b: (0, 0)),
                pl.BlockSpec(fcw.shape, lambda b: (0, 0)),
                pl.BlockSpec(fcb.shape, lambda b: (0, 0)),
            ],
            out_specs=pl.BlockSpec((tb, n_out), lambda b: (b, 0)),
        ),
        compiler_params=pltpu.CompilerParams(
            dimension_semantics=("parallel",),
            vmem_limit_bytes=int(vmem_limit)),
        cost_estimate=cost,
    )(x9, w1c, b1, w2, b2, fcw, fcb)


def reference(x, params):
    """Pure-JAX reference mirroring the PyTorch module exactly."""
    w1, b1, w2, b2, fcw, fcb = params
    h = jnp.transpose(x, (0, 2, 1))            # (B, 3, L) == permute(0, 2, 1)

    def conv_relu(h, w, b):
        wt = jnp.transpose(w, (2, 1, 0))       # (K,Cin,Cout) -> torch (Cout,Cin,K)
        y = jax.lax.conv_general_dilated(
            h, wt, window_strides=(1,), padding=((1, 1),),
            dimension_numbers=("NCH", "OIH", "NCH"),
            precision=jax.lax.Precision.HIGHEST)
        return jax.nn.relu(y + b.reshape(1, -1, 1))

    h = conv_relu(h, w1, b1)
    h = conv_relu(h, w2, b2)
    pooled = jnp.mean(h, axis=-1)              # AdaptiveAvgPool1d(1) + squeeze
    return jnp.dot(pooled, fcw, precision=jax.lax.Precision.HIGHEST) + fcb


def init_params(key):
    k1, k2, k3, k4, k5, k6 = jax.random.split(key, 6)
    # conv1: torch (16, 3, 3) -> stored as (K, Cin, Cout) = (3, 3, 16)
    w1 = jax.random.normal(k1, (3, 3, 16), jnp.float32) * 0.2
    b1 = jax.random.normal(k2, (1, 16), jnp.float32) * 0.1
    # conv2: torch (32, 16, 3) -> (3, 16, 32)
    w2 = jax.random.normal(k3, (3, 16, 32), jnp.float32) * 0.1
    b2 = jax.random.normal(k4, (1, 32), jnp.float32) * 0.1
    # fc1: torch (256, 32) -> stored transposed as (32, 256)
    fcw = jax.random.normal(k5, (32, 256), jnp.float32) * 0.1
    fcb = jax.random.normal(k6, (1, 256), jnp.float32) * 0.1
    return w1, b1, w2, b2, fcw, fcb


if __name__ == "__main__":
    key = jax.random.PRNGKey(0)
    kx, kx2, kp = jax.random.split(key, 3)
    params = init_params(kp)

    # Small test shape from the module spec: (B, L, C) = (2, 16, 3).
    B, L, Cin = 2, 16, 3
    x = jax.random.normal(kx, (B, L, Cin), jnp.float32)

    out = jax.block_until_ready(camera_model(x, params))
    ref = jax.block_until_ready(reference(x, params))
    assert out.shape == (B, 256), out.shape
    assert jnp.allclose(out, ref, atol=1e-3, rtol=1e-3), (
        f"max abs err {jnp.max(jnp.abs(out - ref))}")

    # Multi-step grid path (batch tiling: B=16 -> TB=8 -> grid=(2,)),
    # exercising the two-TensorCore split on v7x.
    B2 = 16
    x2 = jax.random.normal(kx2, (B2, L, Cin), jnp.float32)
    out2 = jax.block_until_ready(camera_model(x2, params))
    ref2 = jax.block_until_ready(reference(x2, params))
    assert out2.shape == (B2, 256), out2.shape
    assert jnp.allclose(out2, ref2, atol=1e-3, rtol=1e-3), (
        f"max abs err {jnp.max(jnp.abs(out2 - ref2))}")

    print("KERNEL_OK")
</pallas_src>

<mosaic_0001>
module attributes {stable_mosaic.version = 11 : i64} {
  func.func @camera_kernel(%arg0: i32, %arg1: memref<32x9xf32, #tpu.memory_space<vmem>>, %arg2: memref<9x16xf32, #tpu.memory_space<vmem>>, %arg3: memref<1x16xf32, #tpu.memory_space<vmem>>, %arg4: memref<3x16x32xf32, #tpu.memory_space<vmem>>, %arg5: memref<1x32xf32, #tpu.memory_space<vmem>>, %arg6: memref<32x256xf32, #tpu.memory_space<vmem>>, %arg7: memref<1x256xf32, #tpu.memory_space<vmem>>, %arg8: memref<2x256xf32, #tpu.memory_space<vmem>>) attributes {dimension_semantics = [#tpu.dimension_semantics<parallel>], iteration_bounds = array<i64: 1>, scalar_prefetch = 0 : i64, scratch_operands = 0 : i64, tpu.core_type = #tpu.core_type<tc>, window_params = [{transform_indices = @transform_0, window_bounds = array<i64: 32, 9>}, {pipeline_mode = #tpu.pipeline_mode<synchronous>, transform_indices = @transform_1, window_bounds = array<i64: 9, 16>}, {pipeline_mode = #tpu.pipeline_mode<synchronous>, transform_indices = @transform_2, window_bounds = array<i64: 1, 16>}, {pipeline_mode = #tpu.pipeline_mode<synchronous>, transform_indices = @transform_3, window_bounds = array<i64: 3, 16, 32>}, {pipeline_mode = #tpu.pipeline_mode<synchronous>, transform_indices = @transform_4, window_bounds = array<i64: 1, 32>}, {pipeline_mode = #tpu.pipeline_mode<synchronous>, transform_indices = @transform_5, window_bounds = array<i64: 32, 256>}, {pipeline_mode = #tpu.pipeline_mode<synchronous>, transform_indices = @transform_6, window_bounds = array<i64: 1, 256>}, {transform_indices = @transform_7, window_bounds = array<i64: 2, 256>}]} {
    %c0 = arith.constant 0 : index
    %c0_0 = arith.constant 0 : index
    %0 = vector.load %arg1[%c0, %c0_0] : memref<32x9xf32, #tpu.memory_space<vmem>>, vector<32x9xf32>
    %c0_1 = arith.constant 0 : index
    %c0_2 = arith.constant 0 : index
    %1 = vector.load %arg2[%c0_1, %c0_2] : memref<9x16xf32, #tpu.memory_space<vmem>>, vector<9x16xf32>
    %cst = arith.constant dense<0.000000e+00> : vector<32x16xf32>
    %2 = tpu.matmul %0, %1, %cst {dimension_numbers = #tpu.dot_dimension_numbers<[1], [0], [0], [1], [0, 0, 1, 1], [], []>} : vector<32x9xf32>, vector<9x16xf32>, vector<32x16xf32> -> vector<32x16xf32>
    %c0_3 = arith.constant 0 : index
    %c0_4 = arith.constant 0 : index
    %3 = vector.load %arg3[%c0_3, %c0_4] : memref<1x16xf32, #tpu.memory_space<vmem>>, vector<1x16xf32>
    %4 = vector.broadcast %3 : vector<1x16xf32> to vector<32x16xf32>
    %5 = arith.addf %2, %4 : vector<32x16xf32>
    %cst_5 = arith.constant 0.000000e+00 : f32
    %6 = vector.broadcast %cst_5 : f32 to vector<32x16xf32>
    %7 = arith.maximumf %5, %6 : vector<32x16xf32>
    %8 = tpu.iota {dimensions = array<i32: 0>} : vector<32x1xi32>
    %c16_i32 = arith.constant 16 : i32
    %c0_i32 = arith.constant 0 : i32
    %9 = arith.cmpi eq, %c16_i32, %c0_i32 : i32
    %c1_i32 = arith.constant 1 : i32
    %10 = arith.select %9, %c1_i32, %c16_i32 : i32
    %11 = vector.broadcast %10 : i32 to vector<32x1xi32>
    %12 = arith.remsi %8, %11 : vector<32x1xi32>
    %c0_i32_6 = arith.constant 0 : i32
    %13 = vector.broadcast %c0_i32_6 : i32 to vector<32x1xi32>
    %14 = arith.cmpi ne, %12, %13 : vector<32x1xi32>
    %c0_i32_7 = arith.constant 0 : i32
    %15 = vector.broadcast %c0_i32_7 : i32 to vector<32x1xi32>
    %16 = arith.cmpi slt, %12, %15 : vector<32x1xi32>
    %c0_i32_8 = arith.constant 0 : i32
    %17 = arith.cmpi slt, %10, %c0_i32_8 : i32
    %18 = vector.broadcast %17 : i1 to vector<32x1xi1>
    %19 = vector.broadcast %18 : vector<32x1xi1> to vector<32x1xi1>
    %20 = arith.xori %16, %19 : vector<32x1xi1>
    %21 = arith.andi %20, %14 : vector<32x1xi1>
    %22 = vector.broadcast %10 : i32 to vector<32x1xi32>
    %23 = arith.addi %12, %22 : vector<32x1xi32>
    %24 = arith.select %21, %23, %12 : vector<32x1xi1>, vector<32x1xi32>
    %c0_i32_9 = arith.constant 0 : i32
    %25 = vector.broadcast %c0_i32_9 : i32 to vector<32x1xi32>
    %26 = arith.cmpi eq, %24, %25 : vector<32x1xi32>
    %c15_i32 = arith.constant 15 : i32
    %27 = vector.broadcast %c15_i32 : i32 to vector<32x1xi32>
    %28 = arith.cmpi eq, %24, %27 : vector<32x1xi32>
    %c1 = arith.constant 1 : index
    %c0_10 = arith.constant 0 : index
    %c0_11 = arith.constant 0 : index
    %29 = vector.load %arg4[%c1, %c0_10, %c0_11] : memref<3x16x32xf32, #tpu.memory_space<vmem>>, vector<1x16x32xf32>
    %30 = vector.shape_cast %29 : vector<1x16x32xf32> to vector<16x32xf32>
    %cst_12 = arith.constant dense<0.000000e+00> : vector<32x32xf32>
    %31 = tpu.matmul %7, %30, %cst_12 {dimension_numbers = #tpu.dot_dimension_numbers<[1], [0], [0], [1], [0, 0, 1, 1], [], []>} : vector<32x16xf32>, vector<16x32xf32>, vector<32x32xf32> -> vector<32x32xf32>
    %c1_i32_13 = arith.constant 1 : i32
    %32 = tpu.dynamic_rotate %7 by %c1_i32_13 dim 0 : vector<32x16xf32>, i32 -> vector<32x16xf32>
    %cst_14 = arith.constant 0.000000e+00 : f32
    %33 = vector.shape_cast %26 : vector<32x1xi1> to vector<32x1xi1>
    %34 = vector.broadcast %33 : vector<32x1xi1> to vector<32x16xi1>
    %35 = vector.broadcast %cst_14 : f32 to vector<32x16xf32>
    %36 = arith.select %34, %35, %32 : vector<32x16xi1>, vector<32x16xf32>
    %c0_15 = arith.constant 0 : index
    %c0_16 = arith.constant 0 : index
    %c0_17 = arith.constant 0 : index
    %37 = vector.load %arg4[%c0_15, %c0_16, %c0_17] : memref<3x16x32xf32, #tpu.memory_space<vmem>>, vector<1x16x32xf32>
    %38 = vector.shape_cast %37 : vector<1x16x32xf32> to vector<16x32xf32>
    %cst_18 = arith.constant dense<0.000000e+00> : vector<32x32xf32>
    %39 = tpu.matmul %36, %38, %cst_18 {dimension_numbers = #tpu.dot_dimension_numbers<[1], [0], [0], [1], [0, 0, 1, 1], [], []>} : vector<32x16xf32>, vector<16x32xf32>, vector<32x32xf32> -> vector<32x32xf32>
    %40 = arith.addf %31, %39 : vector<32x32xf32>
    %c31_i32 = arith.constant 31 : i32
    %41 = tpu.dynamic_rotate %7 by %c31_i32 dim 0 : vector<32x16xf32>, i32 -> vector<32x16xf32>
    %cst_19 = arith.constant 0.000000e+00 : f32
    %42 = vector.shape_cast %28 : vector<32x1xi1> to vector<32x1xi1>
    %43 = vector.broadcast %42 : vector<32x1xi1> to vector<32x16xi1>
    %44 = vector.broadcast %cst_19 : f32 to vector<32x16xf32>
    %45 = arith.select %43, %44, %41 : vector<32x16xi1>, vector<32x16xf32>
    %c2 = arith.constant 2 : index
    %c0_20 = arith.constant 0 : index
    %c0_21 = arith.constant 0 : index
    %46 = vector.load %arg4[%c2, %c0_20, %c0_21] : memref<3x16x32xf32, #tpu.memory_space<vmem>>, vector<1x16x32xf32>
    %47 = vector.shape_cast %46 : vector<1x16x32xf32> to vector<16x32xf32>
    %cst_22 = arith.constant dense<0.000000e+00> : vector<32x32xf32>
    %48 = tpu.matmul %45, %47, %cst_22 {dimension_numbers = #tpu.dot_dimension_numbers<[1], [0], [0], [1], [0, 0, 1, 1], [], []>} : vector<32x16xf32>, vector<16x32xf32>, vector<32x32xf32> -> vector<32x32xf32>
    %49 = arith.addf %40, %48 : vector<32x32xf32>
    %c0_23 = arith.constant 0 : index
    %c0_24 = arith.constant 0 : index
    %50 = vector.load %arg5[%c0_23, %c0_24] : memref<1x32xf32, #tpu.memory_space<vmem>>, vector<1x32xf32>
    %51 = vector.broadcast %50 : vector<1x32xf32> to vector<32x32xf32>
    %52 = arith.addf %49, %51 : vector<32x32xf32>
    %cst_25 = arith.constant 0.000000e+00 : f32
    %53 = vector.broadcast %cst_25 : f32 to vector<32x32xf32>
    %54 = arith.maximumf %52, %53 : vector<32x32xf32>
    %55 = vector.shape_cast %54 : vector<32x32xf32> to vector<2x16x32xf32>
    %cst_26 = arith.constant dense<0.000000e+00> : vector<2x32xf32>
    %56 = vector.multi_reduction <add>, %55, %cst_26 [1] : vector<2x16x32xf32> to vector<2x32xf32>
    %cst_27 = arith.constant 1.600000e+01 : f32
    %57 = vector.broadcast %cst_27 : f32 to vector<2x32xf32>
    %58 = arith.divf %56, %57 : vector<2x32xf32>
    %c0_28 = arith.constant 0 : index
    %c0_29 = arith.constant 0 : index
    %59 = vector.load %arg6[%c0_28, %c0_29] : memref<32x256xf32, #tpu.memory_space<vmem>>, vector<32x256xf32>
    %cst_30 = arith.constant dense<0.000000e+00> : vector<2x256xf32>
    %60 = tpu.matmul %58, %59, %cst_30 {dimension_numbers = #tpu.dot_dimension_numbers<[1], [0], [0], [1], [0, 0, 1, 1], [], []>} : vector<2x32xf32>, vector<32x256xf32>, vector<2x256xf32> -> vector<2x256xf32>
    %c0_31 = arith.constant 0 : index
    %c0_32 = arith.constant 0 : index
    %61 = vector.load %arg7[%c0_31, %c0_32] : memref<1x256xf32, #tpu.memory_space<vmem>>, vector<1x256xf32>
    %62 = vector.broadcast %61 : vector<1x256xf32> to vector<2x256xf32>
    %63 = arith.addf %60, %62 : vector<2x256xf32>
    %c0_33 = arith.constant 0 : index
    %c0_34 = arith.constant 0 : index
    %64 = vector.load %arg8[%c0_33, %c0_34] : memref<2x256xf32, #tpu.memory_space<vmem>>, vector<2x256xf32>
    tpu.vector_store %arg8[%c0_33, %c0_34], %63 {strides = array<i32>} : memref<2x256xf32, #tpu.memory_space<vmem>>, vector<2x256xf32>,
    return
  }
  func.func @transform_0(%arg0: i32) -> (i32, i32) {
    %c0_i32 = arith.constant 0 : i32
    %c0_i32_0 = arith.constant 0 : i32
    return %arg0, %c0_i32 : i32, i32
  }
  func.func @transform_1(%arg0: i32) -> (i32, i32) {
    %c0_i32 = arith.constant 0 : i32
    %c0_i32_0 = arith.constant 0 : i32
    %c0_i32_1 = arith.constant 0 : i32
    return %c0_i32, %c0_i32_0 : i32, i32
  }
  func.func @transform_2(%arg0: i32) -> (i32, i32) {
    %c0_i32 = arith.constant 0 : i32
    %c0_i32_0 = arith.constant 0 : i32
    %c0_i32_1 = arith.constant 0 : i32
    return %c0_i32, %c0_i32_0 : i32, i32
  }
  func.func @transform_3(%arg0: i32) -> (i32, i32, i32) {
    %c0_i32 = arith.constant 0 : i32
    %c0_i32_0 = arith.constant 0 : i32
    %c0_i32_1 = arith.constant 0 : i32
    %c0_i32_2 = arith.constant 0 : i32
    return %c0_i32, %c0_i32_0, %c0_i32_1 : i32, i32, i32
  }
  func.func @transform_4(%arg0: i32) -> (i32, i32) {
    %c0_i32 = arith.constant 0 : i32
    %c0_i32_0 = arith.constant 0 : i32
    %c0_i32_1 = arith.constant 0 : i32
    return %c0_i32, %c0_i32_0 : i32, i32
  }
  func.func @transform_5(%arg0: i32) -> (i32, i32) {
    %c0_i32 = arith.constant 0 : i32
    %c0_i32_0 = arith.constant 0 : i32
    %c0_i32_1 = arith.constant 0 : i32
    return %c0_i32, %c0_i32_0 : i32, i32
  }
  func.func @transform_6(%arg0: i32) -> (i32, i32) {
    %c0_i32 = arith.constant 0 : i32
    %c0_i32_0 = arith.constant 0 : i32
    %c0_i32_1 = arith.constant 0 : i32
    return %c0_i32, %c0_i32_0 : i32, i32
  }
  func.func @transform_7(%arg0: i32) -> (i32, i32) {
    %c0_i32 = arith.constant 0 : i32
    %c0_i32_0 = arith.constant 0 : i32
    return %arg0, %c0_i32 : i32, i32
  }
}

</mosaic_0001>

<llo_original>
// kernel: tpu_custom_call.1
$region0: #{tpu_custom_call.1}
  #allocation0 [shape = 'u32[]', space=smem, size = 0x4, offset = 0x4, fixed_abs, tag = 'smem constant byte address 0x4 - core index']
  #allocation1 [shape = 'u32[144,128]{1,0:T(1,128)}', space=vmem, size = 0x12000, scoped, tag = 'internal scratch']
  %s0 = inlined_call_operand.vmem [shape: f32[32,9], index: 0, kind: input, shape index: {}]
  %s1 = inlined_call_operand.hbm [shape: f32[9,16], index: 1, kind: input, shape index: {}]
  %s2 = inlined_call_operand.hbm [shape: f32[1,16], index: 2, kind: input, shape index: {}]
  %s3 = inlined_call_operand.hbm [shape: f32[3,16,32], index: 3, kind: input, shape index: {}]
  %s4 = inlined_call_operand.hbm [shape: f32[1,32], index: 4, kind: input, shape index: {}]
  %s5 = inlined_call_operand.vmem [shape: f32[32,256], index: 5, kind: input, shape index: {}]
  %s6 = inlined_call_operand.vmem [shape: f32[1,256], index: 6, kind: input, shape index: {}]
  %s7 = inlined_call_operand.hbm [shape: f32[2,256], index: 7, kind: output, shape index: {}]
  %s8 = sld [smem:[#allocation0]]
  $region54: #{tpu_custom_call.1} parent=0
    _
  %s10 = ssub.s32 1, %s8
  %s11 = scalar_select 0, %s10, %s8
  $region1: #{tpu_custom_call.1} parent=0
    #allocation2 [shape = 'u8[8192]{0}', space=vmem, size = 0x2000, scoped, tag = 'input window, operand 1, single buffered']
    #allocation3 [shape = 's32[1]{0}', space=sflag, size = 0x4, scoped, tag = 'scoped memory for tpu_custom_call.1']
    #allocation4 [shape = 's32[1]{0}', space=sflag, size = 0x4, scoped, tag = 'scoped memory for tpu_custom_call.1']
    #allocation5 [shape = 'u8[512]{0}', space=vmem, size = 0x400, scoped, tag = 'input window, operand 2, single buffered']
    #allocation6 [shape = 's32[1]{0}', space=sflag, size = 0x4, scoped, tag = 'scoped memory for tpu_custom_call.1']
    #allocation7 [shape = 'u8[24576]{0}', space=vmem, size = 0x6000, scoped, tag = 'input window, operand 3, single buffered']
    #allocation8 [shape = 'u8[512]{0}', space=vmem, size = 0x400, scoped, tag = 'input window, operand 4, single buffered']
    #allocation9 [shape = 's32[1]{0}', space=sflag, size = 0x4, scoped, tag = 'scoped memory for tpu_custom_call.1']
    #allocation10 [shape = 'u8[2048]{0}', space=vmem, size = 0x800, scoped, tag = 'output window, operand 0, single buffered']
    %12 = vsyncpa [#allocation3], 0
    %13 = vsyncpa [#allocation6], 0
    %14 = vsyncpa [#allocation9], 0
    %15 = vsyncpa [#allocation4], 0
    // Predicated region
    $region2: #{tpu_custom_call.1} parent=1 // pred_check
      _
    $region3: #{tpu_custom_call.1} parent=1 // pred_check_branch
      %17 = sbr.rel (0) target = $region5
    $region4: #{tpu_custom_call.1} parent=1 // pred_region
      _
    $region5: #{tpu_custom_call.1} parent=1 // pred_fallthru
      _
    // Predicated region
    $region6: #{tpu_custom_call.1} parent=1 // pred_check
      _
    $region7: #{tpu_custom_call.1} parent=1 // pred_check_branch
      %19 = sbr.rel (0) target = $region9
    $region8: #{tpu_custom_call.1} parent=1 // pred_region
      %s21 = ssub.s32 256, 256
      %22 = vsyncadd [#allocation3], %s21
      %s23 = sshll.u32 [#allocation2], 4
      %s24 = int_to_ptr.vmem [resolvable:$true] %s23
      %29 = dma.hbm_to_vmem [thread:$0]  %s1, 256, %s24, [#allocation3], 128, 128, 8
    $region9: #{tpu_custom_call.1} parent=1 // pred_fallthru
      _
    // Predicated region
    $region10: #{tpu_custom_call.1} parent=1 // pred_check
      _
    $region11: #{tpu_custom_call.1} parent=1 // pred_check_branch
      %31 = sbr.rel (0) target = $region13
    $region12: #{tpu_custom_call.1} parent=1 // pred_region
      %s33 = ssub.s32 16, 16
      %34 = vsyncadd [#allocation6], %s33
      %s36 = sshll.u32 [#allocation5], 4
      %s37 = int_to_ptr.vmem [resolvable:$true] %s36
      %39 = dma.hbm_to_vmem [thread:$0]  %s2, 16, %s37, [#allocation6]
    $region13: #{tpu_custom_call.1} parent=1 // pred_fallthru
      _
    // Predicated region
    $region14: #{tpu_custom_call.1} parent=1 // pred_check
      _
    $region15: #{tpu_custom_call.1} parent=1 // pred_check_branch
      %41 = sbr.rel (0) target = $region17
    $region16: #{tpu_custom_call.1} parent=1 // pred_region
      %s43 = ssub.s32 768, 768
      %44 = vsyncadd [#allocation6], %s43
      %s45 = sshll.u32 [#allocation7], 4
      %s46 = int_to_ptr.vmem [resolvable:$true] %s45
      %51 = dma.hbm_to_vmem [thread:$0]  %s3, 768, %s46, [#allocation6], 128, 128, 8
    $region17: #{tpu_custom_call.1} parent=1 // pred_fallthru
      _
    // Predicated region
    $region18: #{tpu_custom_call.1} parent=1 // pred_check
      _
    $region19: #{tpu_custom_call.1} parent=1 // pred_check_branch
      %53 = sbr.rel (0) target = $region21
    $region20: #{tpu_custom_call.1} parent=1 // pred_region
      %s55 = ssub.s32 16, 16
      %56 = vsyncadd [#allocation9], %s55
      %s58 = sshll.u32 [#allocation8], 4
      %s59 = int_to_ptr.vmem [resolvable:$true] %s58
      %61 = dma.hbm_to_vmem [thread:$0]  %s4, 16, %s59, [#allocation9]
    $region21: #{tpu_custom_call.1} parent=1 // pred_fallthru
      _
    // Predicated region
    $region22: #{tpu_custom_call.1} parent=1 // pred_check
      _
    $region23: #{tpu_custom_call.1} parent=1 // pred_check_branch
      %63 = sbr.rel (0) target = $region25
    $region24: #{tpu_custom_call.1} parent=1 // pred_region
      _
    $region25: #{tpu_custom_call.1} parent=1 // pred_fallthru
      _
    // Predicated region
    $region26: #{tpu_custom_call.1} parent=1 // pred_check
      _
    $region27: #{tpu_custom_call.1} parent=1 // pred_check_branch
      %65 = sbr.rel (0) target = $region29
    $region28: #{tpu_custom_call.1} parent=1 // pred_region
      _
    $region29: #{tpu_custom_call.1} parent=1 // pred_fallthru
      _
    // Predicated region
    $region30: #{tpu_custom_call.1} parent=1 // pred_check
      _
    $region31: #{tpu_custom_call.1} parent=1 // pred_check_branch
      %67 = sbr.rel (0) target = $region33
    $region32: #{tpu_custom_call.1} parent=1 // pred_region
      %68 = dma.done [#allocation3], 256
    $region33: #{tpu_custom_call.1} parent=1 // pred_fallthru
      _
    // Predicated region
    $region34: #{tpu_custom_call.1} parent=1 // pred_check
      _
    $region35: #{tpu_custom_call.1} parent=1 // pred_check_branch
      %70 = sbr.rel (0) target = $region37
    $region36: #{tpu_custom_call.1} parent=1 // pred_region
      %71 = dma.done [#allocation6], 16
    $region37: #{tpu_custom_call.1} parent=1 // pred_fallthru
      _
    // Predicated region
    $region38: #{tpu_custom_call.1} parent=1 // pred_check
      _
    $region39: #{tpu_custom_call.1} parent=1 // pred_check_branch
      %73 = sbr.rel (0) target = $region41
    $region40: #{tpu_custom_call.1} parent=1 // pred_region
      %74 = dma.done [#allocation6], 768
    $region41: #{tpu_custom_call.1} parent=1 // pred_fallthru
      _
    // Predicated region
    $region42: #{tpu_custom_call.1} parent=1 // pred_check
      _
    $region43: #{tpu_custom_call.1} parent=1 // pred_check_branch
      %76 = sbr.rel (0) target = $region45
    $region44: #{tpu_custom_call.1} parent=1 // pred_region
      %77 = dma.done [#allocation9], 16
    $region45: #{tpu_custom_call.1} parent=1 // pred_fallthru
      _
    %v78 = vld [vmem:[%s0] sm:$0xff]
    %v79 = vld [vmem:[%s0 + $0x8] sm:$0xff]
    %v80 = vld [vmem:[%s0 + $0x10] sm:$0xff]
    %v81 = vld [vmem:[%s0 + $0x18] sm:$0xff]
    %v82 = vld [vmem:[#allocation2] sm:$0xff]
    %v83 = vld [vmem:[#allocation2 + $0x8] sm:$0x1]
    %v84 = vld [vmem:[#allocation5] sm:$0x1]
    %v86 = vlaneseq
    %v87 = vshrl.u32 %v86, 7
    %v88 = vsub.s32 0, %v87
    %v89 = vrot.slane %v84, %v88
    %vm91 = vcmask 72704
    %v93 = vsel %vm91, %v78, 0
    %v96 = vsel %vm91, %v79, 0
    %v99 = vsel %vm91, %v80, 0
    %v102 = vsel %vm91, %v81, 0
    %vm104 = vcmask 1040384
    %v106 = vsel %vm104, %v83, 0
    %108 = vmatprep.subr.mxu0 0.0
    %109 = vmatpush1.msra.mxu0 %v82
    %110 = vmatprep.subr.mxu0 0.0
    %111 = vmatpush1.msra.mxu0 %v106
    %112 = vmatprep.subr.mxu0 0.0
    %113 = vmatpush1.msra.mxu0 0.0
    %114 = vmatprep.subr.mxu0 0.0
    %115 = vmatpush1.msra.mxu0 0.0
    %116 = vmatprep.subr.mxu0 0.0
    %117 = vmatpush1.msra.mxu0 0.0
    %118 = vmatprep.subr.mxu0 0.0
    %119 = vmatpush1.msra.mxu0 0.0
    %120 = vmatprep.subr.mxu0 0.0
    %121 = vmatpush1.msra.mxu0 0.0
    %122 = vmatprep.subr.mxu0 0.0
    %123 = vmatpush1.msra.mxu0 0.0
    %124 = vmatprep.subr.mxu0 0.0
    %125 = vmatpush1.msra.mxu0 0.0
    %126 = vmatprep.subr.mxu0 0.0
    %127 = vmatpush1.msra.mxu0 0.0
    %128 = vmatprep.subr.mxu0 0.0
    %129 = vmatpush1.msra.mxu0 0.0
    %130 = vmatprep.subr.mxu0 0.0
    %131 = vmatpush1.msra.mxu0 0.0
    %132 = vmatprep.subr.mxu0 0.0
    %133 = vmatpush1.msra.mxu0 0.0
    %134 = vmatprep.subr.mxu0 0.0
    %135 = vmatpush1.msra.mxu0 0.0
    %136 = vmatprep.subr.mxu0 0.0
    %137 = vmatpush1.msra.mxu0 0.0
    %138 = vmatprep.subr.mxu0 0.0
    %139 = vmatpush1.msra.mxu0 0.0
    %140 = vmatprep.subr.mxu0 0.0
    %141 = vmatpush1.msra.mxu0 0.0
    %142 = vmatprep.subr.mxu0 0.0
    %143 = vmatpush1.msra.mxu0 0.0
    %144 = vmatprep.subr.mxu0 0.0
    %145 = vmatpush1.msra.mxu0 0.0
    %146 = vmatprep.subr.mxu0 0.0
    %147 = vmatpush1.msra.mxu0 0.0
    %148 = vmatprep.subr.mxu0 0.0
    %149 = vmatpush1.msra.mxu0 0.0
    %150 = vmatprep.subr.mxu0 0.0
    %151 = vmatpush1.msra.mxu0 0.0
    %152 = vmatprep.subr.mxu0 0.0
    %153 = vmatpush1.msra.mxu0 0.0
    %154 = vmatprep.subr.mxu0 0.0
    %155 = vmatpush1.msra.mxu0 0.0
    %156 = vmatprep.subr.mxu0 0.0
    %157 = vmatpush1.msra.mxu0 0.0
    %158 = vmatprep.subr.mxu0 0.0
    %159 = vmatpush1.msra.mxu0 0.0
    %160 = vmatprep.subr.mxu0 0.0
    %161 = vmatpush1.msra.mxu0 0.0
    %162 = vmatprep.subr.mxu0 0.0
    %163 = vmatpush1.msra.mxu0 0.0
    %164 = vmatprep.subr.mxu0 0.0
    %165 = vmatpush1.msra.mxu0 0.0
    %166 = vmatprep.subr.mxu0 0.0
    %167 = vmatpush1.msra.mxu0 0.0
    %168 = vmatprep.subr.mxu0 0.0
    %169 = vmatpush1.msra.mxu0 0.0
    %170 = vmatprep.subr.mxu0 0.0
    %171 = vmatpush1.msra.mxu0 0.0
    %172 = vmatprep.mubr.f32.mxu0 0.0
    %173 = vmatmul.mubr.f32.gmra.mrb[0].mxu0 %v93
    %v174 = vpop.f32.mrb[0].mxu0
    %v175 = vadd.f32 %v89, %v174
    %v176 = vpop.f32.mrb[0].mxu0
    %177 = vmatprep.mubr.f32.mxu0 0.0
    %178 = vmatmul.mubr.f32.gmra.mrb[0].mxu0 %v96
    %v179 = vpop.f32.mrb[0].mxu0
    %v180 = vadd.f32 %v89, %v179
    %v181 = vpop.f32.mrb[0].mxu0
    %182 = vmatprep.mubr.f32.mxu0 0.0
    %183 = vmatmul.mubr.f32.gmra.mrb[0].mxu0 %v99
    %v184 = vpop.f32.mrb[0].mxu0
    %v185 = vadd.f32 %v89, %v184
    %v186 = vpop.f32.mrb[0].mxu0
    %187 = vmatprep.mubr.f32.mxu0 0.0
    %188 = vmatmul.mubr.f32.gmra.mrb[0].mxu0 %v102
    %v189 = vpop.f32.mrb[0].mxu0
    %v190 = vadd.f32 %v89, %v189
    %v191 = vpop.f32.mrb[0].mxu0
    %192 = vdwg.mxu0
    %v193 = vmax.f32 %v175, 0.0
    %v194 = vmax.f32 %v180, 0.0
    %v195 = vmax.f32 %v185, 0.0
    %v196 = vmax.f32 %v190, 0.0
    %v197 = vlaneseq
    %v198 = vshrl.u32 %v197, 7
    %v199 = vadd.s32 %v198, 8
    %v200 = vadd.s32 %v198, 16
    %v201 = vadd.s32 %v198, 24
    %vm202 = vcmp.lt.s32.totalorder %v198, 0
    %v203 = vsub.s32 0, %v198
    %v204 = vsel %vm202, %v203, %v198
    %v205 = vshrl.u32 %v204, 4
    %v206 = vand.u32 %v204, 15
    %v207 = vsub.s32 0, %v206
    %v208 = vsel %vm202, %v207, %v206
    %vm209 = vcmp.lt.s32.totalorder %v199, 0
    %v210 = vsub.s32 0, %v199
    %v211 = vsel %vm209, %v210, %v199
    %v212 = vshrl.u32 %v211, 4
    %v213 = vand.u32 %v211, 15
    %v214 = vsub.s32 0, %v213
    %v215 = vsel %vm209, %v214, %v213
    %vm216 = vcmp.lt.s32.totalorder %v200, 0
    %v217 = vsub.s32 0, %v200
    %v218 = vsel %vm216, %v217, %v200
    %v219 = vshrl.u32 %v218, 4
    %v220 = vand.u32 %v218, 15
    %v221 = vsub.s32 0, %v220
    %v222 = vsel %vm216, %v221, %v220
    %vm223 = vcmp.lt.s32.totalorder %v201, 0
    %v224 = vsub.s32 0, %v201
    %v225 = vsel %vm223, %v224, %v201
    %v226 = vshrl.u32 %v225, 4
    %v227 = vand.u32 %v225, 15
    %v228 = vsub.s32 0, %v227
    %v229 = vsel %vm223, %v228, %v227
    %vm230 = vcmp.ne.s32.totalorder %v208, 0
    %vm231 = vcmp.ne.s32.totalorder %v215, 0
    %vm232 = vcmp.ne.s32.totalorder %v222, 0
    %vm233 = vcmp.ne.s32.totalorder %v229, 0
    %vm234 = vcmp.lt.s32.totalorder %v208, 0
    %vm235 = vcmp.lt.s32.totalorder %v215, 0
    %vm236 = vcmp.lt.s32.totalorder %v222, 0
    %vm237 = vcmp.lt.s32.totalorder %v229, 0
    %vm238 = vmand %vm234, %vm230
    %vm239 = vmand %vm235, %vm231
    %vm240 = vmand %vm236, %vm232
    %vm241 = vmand %vm237, %vm233
    %v242 = vadd.s32 %v208, 16
    %v243 = vadd.s32 %v215, 16
    %v244 = vadd.s32 %v222, 16
    %v245 = vadd.s32 %v229, 16
    %v246 = vsel %vm238, %v242, %v208
    %v247 = vsel %vm239, %v243, %v215
    %v248 = vsel %vm240, %v244, %v222
    %v249 = vsel %vm241, %v245, %v229
    %vm250 = vcmp.eq.s32.totalorder %v246, 0
    %vm251 = vcmp.eq.s32.totalorder %v247, 0
    %vm252 = vcmp.eq.s32.totalorder %v248, 0
    %vm253 = vcmp.eq.s32.totalorder %v249, 0
    %vm254 = vcmp.eq.s32.totalorder %v246, 15
    %vm255 = vcmp.eq.s32.totalorder %v247, 15
    %vm256 = vcmp.eq.s32.totalorder %v248, 15
    %vm257 = vcmp.eq.s32.totalorder %v249, 15
    %s258 = scalar_lea.vmem [#allocation7], 16
    %v259 = vld [vmem:[%s258] sm:$0xff]
    %v260 = vld [vmem:[%s258 + $0x8] sm:$0xff]
    %v261 = vrot.slane %v193, 7
    %v262 = vrot.slane %v194, 7
    %v263 = vrot.slane %v195, 7
    %v264 = vrot.slane %v196, 7
    %vm265 = vcmp.lt.s32.totalorder %v198, 1
    %v266 = vsel %vm265, %v263, %v264
    %v267 = vsel %vm265, %v262, %v263
    %v268 = vsel %vm265, %v261, %v262
    %v269 = vsel %vm265, %v264, %v261
    %v270 = vsel %vm250, 1, 0
    %v271 = vsel %vm251, 1, 0
    %v272 = vsel %vm252, 1, 0
    %v273 = vsel %vm253, 1, 0
    %vm274 = vcmp.eq.s32.totalorder %v270, 1
    %vm275 = vcmp.eq.s32.totalorder %v271, 1
    %vm276 = vcmp.eq.s32.totalorder %v272, 1
    %vm277 = vcmp.eq.s32.totalorder %v273, 1
    %v278 = vsel %vm274, 0.0, %v269
    %v279 = vsel %vm275, 0.0, %v268
    %v280 = vsel %vm276, 0.0, %v267
    %v281 = vsel %vm277, 0.0, %v266
    %v282 = vld [vmem:[#allocation7] sm:$0xff]
    %v283 = vld [vmem:[#allocation7 + $0x8] sm:$0xff]
    %vm284 = vcmask 130048
    %v286 = vsel %vm284, %v278, 0
    %v289 = vsel %vm284, %v279, 0
    %v292 = vsel %vm284, %v280, 0
    %v295 = vsel %vm284, %v281, 0
    %297 = vmatprep.subr.mxu0 0.0
    %298 = vmatpush1.msra.mxu0 %v282
    %299 = vmatprep.subr.mxu0 0.0
    %300 = vmatpush1.msra.mxu0 %v283
    %301 = vmatprep.subr.mxu0 0.0
    %302 = vmatpush1.msra.mxu0 0.0
    %303 = vmatprep.subr.mxu0 0.0
    %304 = vmatpush1.msra.mxu0 0.0
    %305 = vmatprep.subr.mxu0 0.0
    %306 = vmatpush1.msra.mxu0 0.0
    %307 = vmatprep.subr.mxu0 0.0
    %308 = vmatpush1.msra.mxu0 0.0
    %309 = vmatprep.subr.mxu0 0.0
    %310 = vmatpush1.msra.mxu0 0.0
    %311 = vmatprep.subr.mxu0 0.0
    %312 = vmatpush1.msra.mxu0 0.0
    %313 = vmatprep.subr.mxu0 0.0
    %314 = vmatpush1.msra.mxu0 0.0
    %315 = vmatprep.subr.mxu0 0.0
    %316 = vmatpush1.msra.mxu0 0.0
    %317 = vmatprep.subr.mxu0 0.0
    %318 = vmatpush1.msra.mxu0 0.0
    %319 = vmatprep.subr.mxu0 0.0
    %320 = vmatpush1.msra.mxu0 0.0
    %321 = vmatprep.subr.mxu0 0.0
    %322 = vmatpush1.msra.mxu0 0.0
    %323 = vmatprep.subr.mxu0 0.0
    %324 = vmatpush1.msra.mxu0 0.0
    %325 = vmatprep.subr.mxu0 0.0
    %326 = vmatpush1.msra.mxu0 0.0
    %327 = vmatprep.subr.mxu0 0.0
    %328 = vmatpush1.msra.mxu0 0.0
    %329 = vmatprep.subr.mxu0 0.0
    %330 = vmatpush1.msra.mxu0 0.0
    %331 = vmatprep.subr.mxu0 0.0
    %332 = vmatpush1.msra.mxu0 0.0
    %333 = vmatprep.subr.mxu0 0.0
    %334 = vmatpush1.msra.mxu0 0.0
    %335 = vmatprep.subr.mxu0 0.0
    %336 = vmatpush1.msra.mxu0 0.0
    %337 = vmatprep.subr.mxu0 0.0
    %338 = vmatpush1.msra.mxu0 0.0
    %339 = vmatprep.subr.mxu0 0.0
    %340 = vmatpush1.msra.mxu0 0.0
    %341 = vmatprep.subr.mxu0 0.0
    %342 = vmatpush1.msra.mxu0 0.0
    %343 = vmatprep.subr.mxu0 0.0
    %344 = vmatpush1.msra.mxu0 0.0
    %345 = vmatprep.subr.mxu0 0.0
    %346 = vmatpush1.msra.mxu0 0.0
    %347 = vmatprep.subr.mxu0 0.0
    %348 = vmatpush1.msra.mxu0 0.0
    %349 = vmatprep.subr.mxu0 0.0
    %350 = vmatpush1.msra.mxu0 0.0
    %351 = vmatprep.subr.mxu0 0.0
    %352 = vmatpush1.msra.mxu0 0.0
    %353 = vmatprep.subr.mxu0 0.0
    %354 = vmatpush1.msra.mxu0 0.0
    %355 = vmatprep.subr.mxu0 0.0
    %356 = vmatpush1.msra.mxu0 0.0
    %357 = vmatprep.subr.mxu0 0.0
    %358 = vmatpush1.msra.mxu0 0.0
    %359 = vmatprep.subr.mxu0 0.0
    %360 = vmatpush1.msra.mxu0 0.0
    %361 = vmatprep.mubr.f32.mxu0 0.0
    %362 = vmatmul.mubr.f32.gmra.mrb[0].mxu0 %v286
    %v363 = vpop.f32.mrb[0].mxu0
    %v364 = vadd.f32 0.0, %v363
    %v365 = vpop.f32.mrb[0].mxu0
    %366 = vmatprep.mubr.f32.mxu0 0.0
    %367 = vmatmul.mubr.f32.gmra.mrb[0].mxu0 %v289
    %v368 = vpop.f32.mrb[0].mxu0
    %v369 = vadd.f32 0.0, %v368
    %v370 = vpop.f32.mrb[0].mxu0
    %371 = vmatprep.mubr.f32.mxu0 0.0
    %372 = vmatmul.mubr.f32.gmra.mrb[0].mxu0 %v292
    %v373 = vpop.f32.mrb[0].mxu0
    %v374 = vadd.f32 0.0, %v373
    %v375 = vpop.f32.mrb[0].mxu0
    %376 = vmatprep.mubr.f32.mxu0 0.0
    %377 = vmatmul.mubr.f32.gmra.mrb[0].mxu0 %v295
    %v378 = vpop.f32.mrb[0].mxu0
    %v379 = vadd.f32 0.0, %v378
    %v380 = vpop.f32.mrb[0].mxu0
    %381 = vdwg.mxu0
    %v383 = vsel %vm284, %v193, 0
    %v386 = vsel %vm284, %v194, 0
    %v389 = vsel %vm284, %v195, 0
    %v392 = vsel %vm284, %v196, 0
    %394 = vmatprep.subr.mxu0 0.0
    %395 = vmatpush1.msra.mxu0 %v259
    %396 = vmatprep.subr.mxu0 0.0
    %397 = vmatpush1.msra.mxu0 %v260
    %398 = vmatprep.subr.mxu0 0.0
    %399 = vmatpush1.msra.mxu0 0.0
    %400 = vmatprep.subr.mxu0 0.0
    %401 = vmatpush1.msra.mxu0 0.0
    %402 = vmatprep.subr.mxu0 0.0
    %403 = vmatpush1.msra.mxu0 0.0
    %404 = vmatprep.subr.mxu0 0.0
    %405 = vmatpush1.msra.mxu0 0.0
    %406 = vmatprep.subr.mxu0 0.0
    %407 = vmatpush1.msra.mxu0 0.0
    %408 = vmatprep.subr.mxu0 0.0
    %409 = vmatpush1.msra.mxu0 0.0
    %410 = vmatprep.subr.mxu0 0.0
    %411 = vmatpush1.msra.mxu0 0.0
    %412 = vmatprep.subr.mxu0 0.0
    %413 = vmatpush1.msra.mxu0 0.0
    %414 = vmatprep.subr.mxu0 0.0
    %415 = vmatpush1.msra.mxu0 0.0
    %416 = vmatprep.subr.mxu0 0.0
    %417 = vmatpush1.msra.mxu0 0.0
    %418 = vmatprep.subr.mxu0 0.0
    %419 = vmatpush1.msra.mxu0 0.0
    %420 = vmatprep.subr.mxu0 0.0
    %421 = vmatpush1.msra.mxu0 0.0
    %422 = vmatprep.subr.mxu0 0.0
    %423 = vmatpush1.msra.mxu0 0.0
    %424 = vmatprep.subr.mxu0 0.0
    %425 = vmatpush1.msra.mxu0 0.0
    %426 = vmatprep.subr.mxu0 0.0
    %427 = vmatpush1.msra.mxu0 0.0
    %428 = vmatprep.subr.mxu0 0.0
    %429 = vmatpush1.msra.mxu0 0.0
    %430 = vmatprep.subr.mxu0 0.0
    %431 = vmatpush1.msra.mxu0 0.0
    %432 = vmatprep.subr.mxu0 0.0
    %433 = vmatpush1.msra.mxu0 0.0
    %434 = vmatprep.subr.mxu0 0.0
    %435 = vmatpush1.msra.mxu0 0.0
    %436 = vmatprep.subr.mxu0 0.0
    %437 = vmatpush1.msra.mxu0 0.0
    %438 = vmatprep.subr.mxu0 0.0
    %439 = vmatpush1.msra.mxu0 0.0
    %440 = vmatprep.subr.mxu0 0.0
    %441 = vmatpush1.msra.mxu0 0.0
    %442 = vmatprep.subr.mxu0 0.0
    %443 = vmatpush1.msra.mxu0 0.0
    %444 = vmatprep.subr.mxu0 0.0
    %445 = vmatpush1.msra.mxu0 0.0
    %446 = vmatprep.subr.mxu0 0.0
    %447 = vmatpush1.msra.mxu0 0.0
    %448 = vmatprep.subr.mxu0 0.0
    %449 = vmatpush1.msra.mxu0 0.0
    %450 = vmatprep.subr.mxu0 0.0
    %451 = vmatpush1.msra.mxu0 0.0
    %452 = vmatprep.subr.mxu0 0.0
    %453 = vmatpush1.msra.mxu0 0.0
    %454 = vmatprep.subr.mxu0 0.0
    %455 = vmatpush1.msra.mxu0 0.0
    %456 = vmatprep.subr.mxu0 0.0
    %457 = vmatpush1.msra.mxu0 0.0
    %458 = vmatprep.mubr.f32.mxu0 0.0
    %459 = vmatmul.mubr.f32.gmra.mrb[0].mxu0 %v383
    %v460 = vpop.f32.mrb[0].mxu0
    %v461 = vadd.f32 %v364, %v460
    %v462 = vpop.f32.mrb[0].mxu0
    %463 = vmatprep.mubr.f32.mxu0 0.0
    %464 = vmatmul.mubr.f32.gmra.mrb[0].mxu0 %v386
    %v465 = vpop.f32.mrb[0].mxu0
    %v466 = vadd.f32 %v369, %v465
    %v467 = vpop.f32.mrb[0].mxu0
    %468 = vmatprep.mubr.f32.mxu0 0.0
    %469 = vmatmul.mubr.f32.gmra.mrb[0].mxu0 %v389
    %v470 = vpop.f32.mrb[0].mxu0
    %v471 = vadd.f32 %v374, %v470
    %v472 = vpop.f32.mrb[0].mxu0
    %473 = vmatprep.mubr.f32.mxu0 0.0
    %474 = vmatmul.mubr.f32.gmra.mrb[0].mxu0 %v392
    %v475 = vpop.f32.mrb[0].mxu0
    %v476 = vadd.f32 %v379, %v475
    %v477 = vpop.f32.mrb[0].mxu0
    %478 = vdwg.mxu0
    %v479 = vrot.slane %v193, 1
    %v480 = vrot.slane %v194, 1
    %v481 = vrot.slane %v195, 1
    %v482 = vrot.slane %v196, 1
    %vm483 = vcmp.lt.s32.totalorder %v198, 7
    %v484 = vsel %vm483, %v481, %v482
    %v485 = vsel %vm483, %v480, %v481
    %v486 = vsel %vm483, %v479, %v480
    %v487 = vsel %vm483, %v482, %v479
    %v488 = vsel %vm254, 1, 0
    %v489 = vsel %vm255, 1, 0
    %v490 = vsel %vm256, 1, 0
    %v491 = vsel %vm257, 1, 0
    %vm492 = vcmp.eq.s32.totalorder %v488, 1
    %vm493 = vcmp.eq.s32.totalorder %v489, 1
    %vm494 = vcmp.eq.s32.totalorder %v490, 1
    %vm495 = vcmp.eq.s32.totalorder %v491, 1
    %v496 = vsel %vm492, 0.0, %v486
    %v497 = vsel %vm493, 0.0, %v485
    %v498 = vsel %vm494, 0.0, %v484
    %v499 = vsel %vm495, 0.0, %v487
    %s500 = scalar_lea.vmem [#allocation7], 32
    %v501 = vld [vmem:[%s500] sm:$0xff]
    %v502 = vld [vmem:[%s500 + $0x8] sm:$0xff]
    %v504 = vsel %vm284, %v496, 0
    %v507 = vsel %vm284, %v497, 0
    %v510 = vsel %vm284, %v498, 0
    %v513 = vsel %vm284, %v499, 0
    %515 = vmatprep.subr.mxu0 0.0
    %516 = vmatpush1.msra.mxu0 %v501
    %517 = vmatprep.subr.mxu0 0.0
    %518 = vmatpush1.msra.mxu0 %v502
    %519 = vmatprep.subr.mxu0 0.0
    %520 = vmatpush1.msra.mxu0 0.0
    %521 = vmatprep.subr.mxu0 0.0
    %522 = vmatpush1.msra.mxu0 0.0
    %523 = vmatprep.subr.mxu0 0.0
    %524 = vmatpush1.msra.mxu0 0.0
    %525 = vmatprep.subr.mxu0 0.0
    %526 = vmatpush1.msra.mxu0 0.0
    %527 = vmatprep.subr.mxu0 0.0
    %528 = vmatpush1.msra.mxu0 0.0
    %529 = vmatprep.subr.mxu0 0.0
    %530 = vmatpush1.msra.mxu0 0.0
    %531 = vmatprep.subr.mxu0 0.0
    %532 = vmatpush1.msra.mxu0 0.0
    %533 = vmatprep.subr.mxu0 0.0
    %534 = vmatpush1.msra.mxu0 0.0
    %535 = vmatprep.subr.mxu0 0.0
    %536 = vmatpush1.msra.mxu0 0.0
    %537 = vmatprep.subr.mxu0 0.0
    %538 = vmatpush1.msra.mxu0 0.0
    %539 = vmatprep.subr.mxu0 0.0
    %540 = vmatpush1.msra.mxu0 0.0
    %541 = vmatprep.subr.mxu0 0.0
    %542 = vmatpush1.msra.mxu0 0.0
    %543 = vmatprep.subr.mxu0 0.0
    %544 = vmatpush1.msra.mxu0 0.0
    %545 = vmatprep.subr.mxu0 0.0
    %546 = vmatpush1.msra.mxu0 0.0
    %547 = vmatprep.subr.mxu0 0.0
    %548 = vmatpush1.msra.mxu0 0.0
    %549 = vmatprep.subr.mxu0 0.0
    %550 = vmatpush1.msra.mxu0 0.0
    %551 = vmatprep.subr.mxu0 0.0
    %552 = vmatpush1.msra.mxu0 0.0
    %553 = vmatprep.subr.mxu0 0.0
    %554 = vmatpush1.msra.mxu0 0.0
    %555 = vmatprep.subr.mxu0 0.0
    %556 = vmatpush1.msra.mxu0 0.0
    %557 = vmatprep.subr.mxu0 0.0
    %558 = vmatpush1.msra.mxu0 0.0
    %559 = vmatprep.subr.mxu0 0.0
    %560 = vmatpush1.msra.mxu0 0.0
    %561 = vmatprep.subr.mxu0 0.0
    %562 = vmatpush1.msra.mxu0 0.0
    %563 = vmatprep.subr.mxu0 0.0
    %564 = vmatpush1.msra.mxu0 0.0
    %565 = vmatprep.subr.mxu0 0.0
    %566 = vmatpush1.msra.mxu0 0.0
    %567 = vmatprep.subr.mxu0 0.0
    %568 = vmatpush1.msra.mxu0 0.0
    %569 = vmatprep.subr.mxu0 0.0
    %570 = vmatpush1.msra.mxu0 0.0
    %571 = vmatprep.subr.mxu0 0.0
    %572 = vmatpush1.msra.mxu0 0.0
    %573 = vmatprep.subr.mxu0 0.0
    %574 = vmatpush1.msra.mxu0 0.0
    %575 = vmatprep.subr.mxu0 0.0
    %576 = vmatpush1.msra.mxu0 0.0
    %577 = vmatprep.subr.mxu0 0.0
    %578 = vmatpush1.msra.mxu0 0.0
    %579 = vmatprep.mubr.f32.mxu0 0.0
    %580 = vmatmul.mubr.f32.gmra.mrb[0].mxu0 %v504
    %v581 = vpop.f32.mrb[0].mxu0
    %v582 = vadd.f32 0.0, %v581
    %v583 = vpop.f32.mrb[0].mxu0
    %584 = vmatprep.mubr.f32.mxu0 0.0
    %585 = vmatmul.mubr.f32.gmra.mrb[0].mxu0 %v507
    %v586 = vpop.f32.mrb[0].mxu0
    %v587 = vadd.f32 0.0, %v586
    %v588 = vpop.f32.mrb[0].mxu0
    %589 = vmatprep.mubr.f32.mxu0 0.0
    %590 = vmatmul.mubr.f32.gmra.mrb[0].mxu0 %v510
    %v591 = vpop.f32.mrb[0].mxu0
    %v592 = vadd.f32 0.0, %v591
    %v593 = vpop.f32.mrb[0].mxu0
    %594 = vmatprep.mubr.f32.mxu0 0.0
    %595 = vmatmul.mubr.f32.gmra.mrb[0].mxu0 %v513
    %v596 = vpop.f32.mrb[0].mxu0
    %v597 = vadd.f32 0.0, %v596
    %v598 = vpop.f32.mrb[0].mxu0
    %599 = vdwg.mxu0
    %v600 = vadd.f32 %v461, %v582
    %v601 = vadd.f32 %v466, %v587
    %v602 = vadd.f32 %v471, %v592
    %v603 = vadd.f32 %v476, %v597
    %v604 = vld [vmem:[#allocation8] sm:$0x1]
    %v606 = vlaneseq
    %v607 = vshrl.u32 %v606, 7
    %v608 = vsub.s32 0, %v607
    %v609 = vrot.slane %v604, %v608
    %v611 = vadd.f32 %v600, %v609
    %v612 = vadd.f32 %v601, %v609
    %v613 = vadd.f32 %v602, %v609
    %v614 = vadd.f32 %v603, %v609
    %v615 = vmax.f32 %v611, 0.0
    %v616 = vmax.f32 %v612, 0.0
    %v617 = vmax.f32 %v613, 0.0
    %v618 = vmax.f32 %v614, 0.0
    %vm619 = vcmask 261120
    %v620 = vsel %vm619, %v615, 0.0
    %v621 = vsel %vm619, %v616, 0.0
    %v622 = vadd.f32 %v620, %v621
    %v623 = vrot.slane %v622, 4
    %v624 = vadd.f32 %v622, %v623
    %v625 = vrot.slane %v624, 2
    %v626 = vadd.f32 %v624, %v625
    %v627 = vrot.slane %v626, 1
    %v628 = vadd.f32 %v626, %v627
    %v629 = vsel %vm619, %v617, 0.0
    %v630 = vsel %vm619, %v618, 0.0
    %v631 = vadd.f32 %v629, %v630
    %v632 = vrot.slane %v631, 4
    %v633 = vadd.f32 %v631, %v632
    %v634 = vrot.slane %v633, 2
    %v635 = vadd.f32 %v633, %v634
    %v636 = vrot.slane %v635, 1
    %v637 = vadd.f32 %v635, %v636
    %v638 = vrcp.pop 16.0
    %v639 = vmul.f32 %v628, %v638
    %v640 = vmul.f32 %v637, %v638
    %v641 = vld [vmem:[%s5] sm:$0xff]
    %v642 = vld [vmem:[%s5 + $0x8] sm:$0xff]
    %v643 = vld [vmem:[%s5 + $0x10] sm:$0xff]
    %v644 = vld [vmem:[%s5 + $0x18] sm:$0xff]
    %v645 = vld [vmem:[%s5 + $0x20] sm:$0xff]
    %v646 = vld [vmem:[%s5 + $0x28] sm:$0xff]
    %v647 = vld [vmem:[%s5 + $0x30] sm:$0xff]
    %v648 = vld [vmem:[%s5 + $0x38] sm:$0xff]
    %v649 = vld [vmem:[%s6] sm:$0x3]
    %v651 = vlaneseq
    %v652 = vshrl.u32 %v651, 7
    %v653 = vsub.s32 0, %v652
    %v654 = vrot.slane %v649, %v653
    %v655 = vlaneseq
    %v656 = vshrl.u32 %v655, 7
    %v657 = vsub.s32 1, %v656
    %v658 = vrot.slane %v649, %v657
    %vm663 = vcmask 1041409
    %v664 = vsel %vm663, %v640, %v639
    %v665 = vsel %vm619, %v664, 0
    %667 = vmatprep.subr.mxu0 %v642
    %668 = vmatpush1.msra.mxu0 %v641
    %669 = vmatprep.subr.mxu0 %v644
    %670 = vmatpush1.msra.mxu0 %v643
    %671 = vmatprep.subr.mxu0 %v646
    %672 = vmatpush1.msra.mxu0 %v645
    %673 = vmatprep.subr.mxu0 %v648
    %674 = vmatpush1.msra.mxu0 %v647
    %675 = vmatprep.subr.mxu0 0.0
    %676 = vmatpush1.msra.mxu0 0.0
    %677 = vmatprep.subr.mxu0 0.0
    %678 = vmatpush1.msra.mxu0 0.0
    %679 = vmatprep.subr.mxu0 0.0
    %680 = vmatpush1.msra.mxu0 0.0
    %681 = vmatprep.subr.mxu0 0.0
    %682 = vmatpush1.msra.mxu0 0.0
    %683 = vmatprep.subr.mxu0 0.0
    %684 = vmatpush1.msra.mxu0 0.0
    %685 = vmatprep.subr.mxu0 0.0
    %686 = vmatpush1.msra.mxu0 0.0
    %687 = vmatprep.subr.mxu0 0.0
    %688 = vmatpush1.msra.mxu0 0.0
    %689 = vmatprep.subr.mxu0 0.0
    %690 = vmatpush1.msra.mxu0 0.0
    %691 = vmatprep.subr.mxu0 0.0
    %692 = vmatpush1.msra.mxu0 0.0
    %693 = vmatprep.subr.mxu0 0.0
    %694 = vmatpush1.msra.mxu0 0.0
    %695 = vmatprep.subr.mxu0 0.0
    %696 = vmatpush1.msra.mxu0 0.0
    %697 = vmatprep.subr.mxu0 0.0
    %698 = vmatpush1.msra.mxu0 0.0
    %699 = vmatprep.subr.mxu0 0.0
    %700 = vmatpush1.msra.mxu0 0.0
    %701 = vmatprep.subr.mxu0 0.0
    %702 = vmatpush1.msra.mxu0 0.0
    %703 = vmatprep.subr.mxu0 0.0
    %704 = vmatpush1.msra.mxu0 0.0
    %705 = vmatprep.subr.mxu0 0.0
    %706 = vmatpush1.msra.mxu0 0.0
    %707 = vmatprep.subr.mxu0 0.0
    %708 = vmatpush1.msra.mxu0 0.0
    %709 = vmatprep.subr.mxu0 0.0
    %710 = vmatpush1.msra.mxu0 0.0
    %711 = vmatprep.subr.mxu0 0.0
    %712 = vmatpush1.msra.mxu0 0.0
    %713 = vmatprep.subr.mxu0 0.0
    %714 = vmatpush1.msra.mxu0 0.0
    %715 = vmatprep.subr.mxu0 0.0
    %716 = vmatpush1.msra.mxu0 0.0
    %717 = vmatprep.subr.mxu0 0.0
    %718 = vmatpush1.msra.mxu0 0.0
    %719 = vmatprep.subr.mxu0 0.0
    %720 = vmatpush1.msra.mxu0 0.0
    %721 = vmatprep.subr.mxu0 0.0
    %722 = vmatpush1.msra.mxu0 0.0
    %723 = vmatprep.subr.mxu0 0.0
    %724 = vmatpush1.msra.mxu0 0.0
    %725 = vmatprep.subr.mxu0 0.0
    %726 = vmatpush1.msra.mxu0 0.0
    %727 = vmatprep.subr.mxu0 0.0
    %728 = vmatpush1.msra.mxu0 0.0
    %729 = vmatprep.subr.mxu0 0.0
    %730 = vmatpush1.msra.mxu0 0.0
    %731 = vmatprep.mubr.f32.mxu0 0.0
    %732 = vmatmul.mubr.f32.gmra.mrb[0].mxu0 %v665
    %v733 = vpop.f32.mrb[0].mxu0
    %v734 = vadd.f32 %v654, %v733
    %v735 = vpop.f32.mrb[0].mxu0
    %v736 = vadd.f32 %v658, %v735
    %737 = vdwg.mxu0
    %v740 = vcombine.low %v734, %v736
    %v742 = vunpack.c.l.s4 1983009808
    %v743 = vunpack.c.0.s8 %v742
    %v744 = vlaneseq
    %v745 = vshrl.u32 %v744, 7
    %v746 = vsub.s32 %v743, %v745
    %v747 = vrot.slane %v740, %v746
    %749 = vst [vmem:[#allocation10] sm:$0xf] %v747
    // Predicated region
    $region46: #{tpu_custom_call.1} parent=1 // pred_check
      _
    $region47: #{tpu_custom_call.1} parent=1 // pred_check_branch
      %751 = sbr.rel (0) target = $region49
    $region48: #{tpu_custom_call.1} parent=1 // pred_region
      %s753 = ssub.s32 64, 64
      %754 = vsyncadd [#allocation4], %s753
      %s756 = sshll.u32 [#allocation10], 4
      %s757 = int_to_ptr.vmem [resolvable:$true] %s756
      %759 = dma.vmem_to_hbm [thread:$0]  %s757, 64, %s7, [#allocation4]
    $region49: #{tpu_custom_call.1} parent=1 // pred_fallthru
      _
    // Predicated region
    $region50: #{tpu_custom_call.1} parent=1 // pred_check
      _
    $region51: #{tpu_custom_call.1} parent=1 // pred_check_branch
      %761 = sbr.rel (0) target = $region53
    $region52: #{tpu_custom_call.1} parent=1 // pred_region
      %762 = dma.done [#allocation4], 64
    $region53: #{tpu_custom_call.1} parent=1 // pred_fallthru
      _
    %763 = vsyncpa [#allocation3], 1
    %764 = vsyncpa [#allocation6], 1
    %765 = vsyncpa [#allocation9], 1
    %766 = vsyncpa [#allocation4], 1

</llo_original>
